<compile_context>
chip_gen: v6e
topology: v6e:2x2x1
jax: 0.10.0
libtpu: 0.0.40
codegen_flags: <defaults>
</compile_context>

<pallas_src>
import functools

import jax
import jax.numpy as jnp
import numpy as np
from jax.experimental import pallas as pl
from jax.experimental.pallas import tpu as pltpu


# ---------------------------------------------------------------------------
# Setup glue (plain numpy): not-a-knot cubic spline coefficients, matching
# scipy.interpolate.CubicSpline(xs, ys, extrapolate=True) for n >= 4.
# ---------------------------------------------------------------------------
def cubic_spline_nak_coeffs(xs, ys):
    xs = np.asarray(xs, dtype=np.float64)
    ys = np.asarray(ys, dtype=np.float64)
    n = len(xs)
    assert n >= 4, "this in-script fit implements the general not-a-knot case"
    dx = np.diff(xs)
    slope = np.diff(ys) / dx

    A = np.zeros((n, n), dtype=np.float64)
    b = np.zeros(n, dtype=np.float64)
    for i in range(1, n - 1):
        A[i, i - 1] = dx[i]
        A[i, i] = 2.0 * (dx[i] + dx[i - 1])
        A[i, i + 1] = dx[i - 1]
        b[i] = 3.0 * (dx[i] * slope[i - 1] + dx[i - 1] * slope[i])
    # not-a-knot boundary conditions (same as scipy)
    d0 = xs[2] - xs[0]
    A[0, 0] = dx[1]
    A[0, 1] = d0
    b[0] = ((dx[0] + 2.0 * d0) * dx[1] * slope[0] + dx[0] ** 2 * slope[1]) / d0
    d1 = xs[-1] - xs[-3]
    A[-1, -1] = dx[-2]
    A[-1, -2] = d1
    b[-1] = (dx[-1] ** 2 * slope[-2] + (2.0 * d1 + dx[-1]) * dx[-2] * slope[-1]) / d1

    s = np.linalg.solve(A, b)  # derivatives at the knots

    t = (s[:-1] + s[1:] - 2.0 * slope) / dx
    c = np.zeros((4, n - 1), dtype=np.float64)
    c[0] = t / dx
    c[1] = (slope - s[:-1]) / dx - t
    c[2] = s[:-1]
    c[3] = ys[:-1]
    return c


# ---------------------------------------------------------------------------
# Pallas kernel: element-wise spline evaluation on a (BR, W) f32 tile.
# All spline constants are compile-time Python floats (immediates).
# ---------------------------------------------------------------------------
def _spline_kernel(x_ref, o_ref, *, coeffs, inv_dis, dis, n):
    x = x_ref[...]                                            # (BR, W) f32
    # interval index: l = min(int(x * (1/dis) + 1e-5), n-2)
    l = jnp.minimum((x * inv_dis + 1e-05).astype(jnp.int32), n - 2)
    # uniform-knot identity: knots[l] == l * dis
    bx = x - l.astype(jnp.float32) * dis
    # coefficient gather: one shared mask per interval, 4 selects each.
    c0 = jnp.full_like(x, coeffs[0][0])
    c1 = jnp.full_like(x, coeffs[1][0])
    c2 = jnp.full_like(x, coeffs[2][0])
    c3 = jnp.full_like(x, coeffs[3][0])
    for j in range(1, n - 1):
        m = l == j
        c0 = jnp.where(m, coeffs[0][j], c0)
        c1 = jnp.where(m, coeffs[1][j], c1)
        c2 = jnp.where(m, coeffs[2][j], c2)
        c3 = jnp.where(m, coeffs[3][j], c3)
    # TODO(synk): reference wraps negative interval indices (numpy negative
    # indexing) for x < 0; inputs here are non-negative so it never triggers.
    # explicit Horner: c0*bx^3 + c1*bx^2 + c2*bx + c3
    v = ((c0 * bx + c1) * bx + c2) * bx + c3
    o_ref[...] = v.astype(o_ref.dtype)


class CubicSplinePackPallas:
    """JAX/Pallas port of CubicSplinePack."""

    LANE_W = 1024          # lane-dense slab width (multiple of 128)
    MAX_BLOCK_ROWS = 512   # (512, 1024) f32 block = 2 MiB

    def __init__(self, samples):
        self.n = n = len(samples)
        xs = np.array([s[0] for s in samples], dtype=np.float64)
        ys = np.array([s[1] for s in samples], dtype=np.float64)
        self.dis = 1.0 / (n - 1)
        # The forward pass assumes uniform samples on [0, 1] (l = x/dis).
        assert np.allclose(xs, np.linspace(0.0, 1.0, n), atol=1e-8), (
            "CubicSplinePack assumes uniformly spaced samples on [0, 1]")
        self.knots_np = xs
        self.coeffs_np = cubic_spline_nak_coeffs(xs, ys)       # (4, n-1)
        # bake as compile-time constants (tuple of tuples of Python floats)
        self.coeffs_const = tuple(
            tuple(float(v) for v in row) for row in self.coeffs_np)

    def __call__(self, b):
        x = b[0]                                               # f32, any shape
        orig_shape = x.shape
        flat = x.reshape(-1)
        total = flat.shape[0]

        W = self.LANE_W
        SUB = 8
        rows = -(-total // W)                                  # ceil div
        rows = ((rows + SUB - 1) // SUB) * SUB                 # multiple of 8
        block_rows = min(self.MAX_BLOCK_ROWS, rows)
        rows = ((rows + block_rows - 1) // block_rows) * block_rows
        pad = rows * W - total
        if pad:
            flat = jnp.pad(flat, (0, pad))
        x2 = flat.reshape(rows, W)
        grid = (rows // block_rows,)

        kernel = functools.partial(
            _spline_kernel,
            coeffs=self.coeffs_const,
            inv_dis=float(1.0 / self.dis),
            dis=float(self.dis),
            n=self.n,
        )

        out2 = pl.pallas_call(
            kernel,
            out_shape=jax.ShapeDtypeStruct((rows, W), x.dtype),
            grid=grid,
            in_specs=[pl.BlockSpec((block_rows, W), lambda i: (i, 0))],
            out_specs=pl.BlockSpec((block_rows, W), lambda i: (i, 0)),
            compiler_params=pltpu.CompilerParams(
                dimension_semantics=("parallel",),
                vmem_limit_bytes=32 * 1024 * 1024,
            ),
        )(x2)

        return out2.reshape(-1)[:total].reshape(orig_shape)


# ---------------------------------------------------------------------------
# Pure-numpy reference (mirrors the PyTorch forward exactly).
# ---------------------------------------------------------------------------
def reference_forward(x_np, knots, coeffs, dis, n):
    x = np.asarray(x_np, dtype=np.float64)
    l = np.minimum((x / dis + 1e-05).astype(int), n - 2)
    bx = x - knots[l]
    v = np.zeros_like(x)
    a = np.ones_like(x)
    for m in reversed(range(4)):
        v = v + a * coeffs[m, l]
        a = a * bx
    return v


if __name__ == "__main__":
    # Deterministic spline samples: n = 9 uniformly spaced points on [0, 1].
    n = 9
    xs = np.linspace(0.0, 1.0, n)
    ys = np.sin(2.0 * np.pi * xs) + 0.5 * xs
    samples = list(zip(xs.tolist(), ys.tolist()))

    mod = CubicSplinePackPallas(samples)

    # Deterministic input: b = (x,), x of shape (2, 4, 16, 16) in [0, 1).
    key = jax.random.PRNGKey(0)
    x = jax.random.uniform(key, (2, 4, 16, 16), dtype=jnp.float32,
                           minval=0.0, maxval=1.0)
    b = (x,)

    out = mod(b)
    out = jax.block_until_ready(out)

    ref = reference_forward(np.asarray(x), mod.knots_np, mod.coeffs_np,
                            mod.dis, mod.n)
    np.testing.assert_allclose(np.asarray(out, dtype=np.float64), ref,
                               rtol=1e-4, atol=1e-4)
    print("KERNEL_OK")
</pallas_src>

<mosaic_0001>
module attributes {stable_mosaic.version = 11 : i64} {
  func.func @_spline_kernel(%arg0: i32, %arg1: memref<8x1024xf32, #tpu.memory_space<vmem>>, %arg2: memref<8x1024xf32, #tpu.memory_space<vmem>>) attributes {dimension_semantics = [#tpu.dimension_semantics<parallel>], iteration_bounds = array<i64: 1>, scalar_prefetch = 0 : i64, scratch_operands = 0 : i64, tpu.core_type = #tpu.core_type<tc>, window_params = [{transform_indices = @transform_0, window_bounds = array<i64: 8, 1024>}, {transform_indices = @transform_1, window_bounds = array<i64: 8, 1024>}]} {
    %c0 = arith.constant 0 : index
    %c0_0 = arith.constant 0 : index
    %0 = vector.load %arg1[%c0, %c0_0] : memref<8x1024xf32, #tpu.memory_space<vmem>>, vector<8x1024xf32>
    %cst = arith.constant 8.000000e+00 : f32
    %1 = vector.broadcast %cst : f32 to vector<8x1024xf32>
    %2 = arith.mulf %0, %1 : vector<8x1024xf32>
    %cst_1 = arith.constant 9.99999974E-6 : f32
    %3 = vector.broadcast %cst_1 : f32 to vector<8x1024xf32>
    %4 = arith.addf %2, %3 : vector<8x1024xf32>
    %5 = arith.fptosi %4 : vector<8x1024xf32> to vector<8x1024xi32>
    %c7_i32 = arith.constant 7 : i32
    %6 = vector.broadcast %c7_i32 : i32 to vector<8x1024xi32>
    %7 = arith.minsi %5, %6 : vector<8x1024xi32>
    %8 = arith.sitofp %7 : vector<8x1024xi32> to vector<8x1024xf32>
    %cst_2 = arith.constant 1.250000e-01 : f32
    %9 = vector.broadcast %cst_2 : f32 to vector<8x1024xf32>
    %10 = arith.mulf %8, %9 : vector<8x1024xf32>
    %11 = arith.subf %0, %10 : vector<8x1024xf32>
    %cst_3 = arith.constant -21.0690022 : f32
    %12 = vector.broadcast %cst_3 : f32 to vector<8x1024xf32>
    %cst_4 = arith.constant -5.35395861 : f32
    %13 = vector.broadcast %cst_4 : f32 to vector<8x1024xf32>
    %cst_5 = arith.constant 7.15530205 : f32
    %14 = vector.broadcast %cst_5 : f32 to vector<8x1024xf32>
    %cst_6 = arith.constant 0.000000e+00 : f32
    %15 = vector.broadcast %cst_6 : f32 to vector<8x1024xf32>
    %c1_i32 = arith.constant 1 : i32
    %16 = vector.broadcast %c1_i32 : i32 to vector<8x1024xi32>
    %17 = arith.cmpi eq, %7, %16 : vector<8x1024xi32>
    %cst_7 = arith.constant -21.0690022 : f32
    %18 = vector.broadcast %cst_7 : f32 to vector<8x1024xf32>
    %19 = arith.select %17, %18, %12 : vector<8x1024xi1>, vector<8x1024xf32>
    %cst_8 = arith.constant -13.2548342 : f32
    %20 = vector.broadcast %cst_8 : f32 to vector<8x1024xf32>
    %21 = arith.select %17, %20, %13 : vector<8x1024xi1>, vector<8x1024xf32>
    %cst_9 = arith.constant 4.82920313 : f32
    %22 = vector.broadcast %cst_9 : f32 to vector<8x1024xf32>
    %23 = arith.select %17, %22, %14 : vector<8x1024xi1>, vector<8x1024xf32>
    %cst_10 = arith.constant 0.769606769 : f32
    %24 = vector.broadcast %cst_10 : f32 to vector<8x1024xf32>
    %25 = arith.select %17, %24, %15 : vector<8x1024xi1>, vector<8x1024xf32>
    %c2_i32 = arith.constant 2 : i32
    %26 = vector.broadcast %c2_i32 : i32 to vector<8x1024xi32>
    %27 = arith.cmpi eq, %7, %26 : vector<8x1024xi32>
    %cst_11 = arith.constant 17.4996967 : f32
    %28 = vector.broadcast %cst_11 : f32 to vector<8x1024xf32>
    %29 = arith.select %27, %28, %19 : vector<8x1024xi1>, vector<8x1024xf32>
    %cst_12 = arith.constant -21.1557102 : f32
    %30 = vector.broadcast %cst_12 : f32 to vector<8x1024xf32>
    %31 = arith.select %27, %30, %21 : vector<8x1024xi1>, vector<8x1024xf32>
    %cst_13 = arith.constant 0.527885199 : f32
    %32 = vector.broadcast %cst_13 : f32 to vector<8x1024xf32>
    %33 = arith.select %27, %32, %23 : vector<8x1024xi1>, vector<8x1024xf32>
    %cst_14 = arith.constant 1.125000e+00 : f32
    %34 = vector.broadcast %cst_14 : f32 to vector<8x1024xf32>
    %35 = arith.select %27, %34, %25 : vector<8x1024xi1>, vector<8x1024xf32>
    %c3_i32 = arith.constant 3 : i32
    %36 = vector.broadcast %c3_i32 : i32 to vector<8x1024xi32>
    %37 = arith.cmpi eq, %7, %36 : vector<8x1024xi32>
    %cst_15 = arith.constant 38.9155312 : f32
    %38 = vector.broadcast %cst_15 : f32 to vector<8x1024xf32>
    %39 = arith.select %37, %38, %29 : vector<8x1024xi1>, vector<8x1024xf32>
    %cst_16 = arith.constant -14.5933237 : f32
    %40 = vector.broadcast %cst_16 : f32 to vector<8x1024xf32>
    %41 = arith.select %37, %40, %31 : vector<8x1024xi1>, vector<8x1024xf32>
    %cst_17 = arith.constant -3.94074392 : f32
    %42 = vector.broadcast %cst_17 : f32 to vector<8x1024xf32>
    %43 = arith.select %37, %42, %33 : vector<8x1024xi1>, vector<8x1024xf32>
    %cst_18 = arith.constant 0.894606769 : f32
    %44 = vector.broadcast %cst_18 : f32 to vector<8x1024xf32>
    %45 = arith.select %37, %44, %35 : vector<8x1024xi1>, vector<8x1024xf32>
    %c4_i32 = arith.constant 4 : i32
    %46 = vector.broadcast %c4_i32 : i32 to vector<8x1024xi32>
    %47 = arith.cmpi eq, %7, %46 : vector<8x1024xi32>
    %cst_19 = arith.constant 38.9155312 : f32
    %48 = vector.broadcast %cst_19 : f32 to vector<8x1024xf32>
    %49 = arith.select %47, %48, %39 : vector<8x1024xi1>, vector<8x1024xf32>
    %cst_20 = arith.constant -7.10542735E-15 : f32
    %50 = vector.broadcast %cst_20 : f32 to vector<8x1024xf32>
    %51 = arith.select %47, %50, %41 : vector<8x1024xi1>, vector<8x1024xf32>
    %cst_21 = arith.constant -5.76490927 : f32
    %52 = vector.broadcast %cst_21 : f32 to vector<8x1024xf32>
    %53 = arith.select %47, %52, %43 : vector<8x1024xi1>, vector<8x1024xf32>
    %cst_22 = arith.constant 2.500000e-01 : f32
    %54 = vector.broadcast %cst_22 : f32 to vector<8x1024xf32>
    %55 = arith.select %47, %54, %45 : vector<8x1024xi1>, vector<8x1024xf32>
    %c5_i32 = arith.constant 5 : i32
    %56 = vector.broadcast %c5_i32 : i32 to vector<8x1024xi32>
    %57 = arith.cmpi eq, %7, %56 : vector<8x1024xi32>
    %cst_23 = arith.constant 17.4996967 : f32
    %58 = vector.broadcast %cst_23 : f32 to vector<8x1024xf32>
    %59 = arith.select %57, %58, %49 : vector<8x1024xi1>, vector<8x1024xf32>
    %cst_24 = arith.constant 14.5933237 : f32
    %60 = vector.broadcast %cst_24 : f32 to vector<8x1024xf32>
    %61 = arith.select %57, %60, %51 : vector<8x1024xi1>, vector<8x1024xf32>
    %cst_25 = arith.constant -3.94074392 : f32
    %62 = vector.broadcast %cst_25 : f32 to vector<8x1024xf32>
    %63 = arith.select %57, %62, %53 : vector<8x1024xi1>, vector<8x1024xf32>
    %cst_26 = arith.constant -0.394606769 : f32
    %64 = vector.broadcast %cst_26 : f32 to vector<8x1024xf32>
    %65 = arith.select %57, %64, %55 : vector<8x1024xi1>, vector<8x1024xf32>
    %c6_i32 = arith.constant 6 : i32
    %66 = vector.broadcast %c6_i32 : i32 to vector<8x1024xi32>
    %67 = arith.cmpi eq, %7, %66 : vector<8x1024xi32>
    %cst_27 = arith.constant -21.0690022 : f32
    %68 = vector.broadcast %cst_27 : f32 to vector<8x1024xf32>
    %69 = arith.select %67, %68, %59 : vector<8x1024xi1>, vector<8x1024xf32>
    %cst_28 = arith.constant 21.1557102 : f32
    %70 = vector.broadcast %cst_28 : f32 to vector<8x1024xf32>
    %71 = arith.select %67, %70, %61 : vector<8x1024xi1>, vector<8x1024xf32>
    %cst_29 = arith.constant 0.527885199 : f32
    %72 = vector.broadcast %cst_29 : f32 to vector<8x1024xf32>
    %73 = arith.select %67, %72, %63 : vector<8x1024xi1>, vector<8x1024xf32>
    %cst_30 = arith.constant -6.250000e-01 : f32
    %74 = vector.broadcast %cst_30 : f32 to vector<8x1024xf32>
    %75 = arith.select %67, %74, %65 : vector<8x1024xi1>, vector<8x1024xf32>
    %c7_i32_31 = arith.constant 7 : i32
    %76 = vector.broadcast %c7_i32_31 : i32 to vector<8x1024xi32>
    %77 = arith.cmpi eq, %7, %76 : vector<8x1024xi32>
    %cst_32 = arith.constant -21.0690022 : f32
    %78 = vector.broadcast %cst_32 : f32 to vector<8x1024xf32>
    %79 = arith.select %77, %78, %69 : vector<8x1024xi1>, vector<8x1024xf32>
    %cst_33 = arith.constant 13.2548342 : f32
    %80 = vector.broadcast %cst_33 : f32 to vector<8x1024xf32>
    %81 = arith.select %77, %80, %71 : vector<8x1024xi1>, vector<8x1024xf32>
    %cst_34 = arith.constant 4.82920313 : f32
    %82 = vector.broadcast %cst_34 : f32 to vector<8x1024xf32>
    %83 = arith.select %77, %82, %73 : vector<8x1024xi1>, vector<8x1024xf32>
    %cst_35 = arith.constant -0.269606769 : f32
    %84 = vector.broadcast %cst_35 : f32 to vector<8x1024xf32>
    %85 = arith.select %77, %84, %75 : vector<8x1024xi1>, vector<8x1024xf32>
    %86 = arith.mulf %79, %11 : vector<8x1024xf32>
    %87 = arith.addf %86, %81 : vector<8x1024xf32>
    %88 = arith.mulf %87, %11 : vector<8x1024xf32>
    %89 = arith.addf %88, %83 : vector<8x1024xf32>
    %90 = arith.mulf %89, %11 : vector<8x1024xf32>
    %91 = arith.addf %90, %85 : vector<8x1024xf32>
    %c0_36 = arith.constant 0 : index
    %c0_37 = arith.constant 0 : index
    %92 = vector.load %arg2[%c0_36, %c0_37] : memref<8x1024xf32, #tpu.memory_space<vmem>>, vector<8x1024xf32>
    tpu.vector_store %arg2[%c0_36, %c0_37], %91 {strides = array<i32>} : memref<8x1024xf32, #tpu.memory_space<vmem>>, vector<8x1024xf32>,
    return
  }
  func.func @transform_0(%arg0: i32) -> (i32, i32) {
    %c0_i32 = arith.constant 0 : i32
    %c0_i32_0 = arith.constant 0 : i32
    return %arg0, %c0_i32 : i32, i32
  }
  func.func @transform_1(%arg0: i32) -> (i32, i32) {
    %c0_i32 = arith.constant 0 : i32
    %c0_i32_0 = arith.constant 0 : i32
    return %arg0, %c0_i32 : i32, i32
  }
}

</mosaic_0001>

<llo_original>
// kernel: tpu_custom_call.1
$region0: #{tpu_custom_call.1}
  #allocation0 [shape = 'u32[]', space=smem, size = 0x4, offset = 0x4, fixed_abs, tag = 'smem constant byte address 0x4 - core index']
  #allocation1 [shape = 'u32[144,128]{1,0:T(1,128)}', space=vmem, size = 0x12000, scoped, tag = 'internal scratch']
  %s0 = inlined_call_operand.hbm [shape: f32[8,1024], index: 0, kind: input, shape index: {}]
  %s1 = inlined_call_operand.hbm [shape: f32[8,1024], index: 1, kind: output, shape index: {}]
  %s2 = sld [smem:[#allocation0]]
  $region18: #{tpu_custom_call.1} parent=0
    _
  %s4 = ssub.s32 1, %s2
  %s5 = scalar_select 0, %s4, %s2
  $region1: #{tpu_custom_call.1} parent=0
    #allocation2 [shape = 'u8[32768]{0}', space=vmem, size = 0x8000, scoped, tag = 'input window, operand 0, single buffered']
    #allocation3 [shape = 's32[1]{0}', space=sflag, size = 0x4, scoped, tag = 'scoped memory for tpu_custom_call.1']
    #allocation4 [shape = 's32[1]{0}', space=sflag, size = 0x4, scoped, tag = 'scoped memory for tpu_custom_call.1']
    #allocation5 [shape = 'u8[32768]{0}', space=vmem, size = 0x8000, scoped, tag = 'output window, operand 0, single buffered']
    %6 = vsyncpa [#allocation3], 0
    %7 = vsyncpa [#allocation4], 0
    // Predicated region
    $region2: #{tpu_custom_call.1} parent=1 // pred_check
      _
    $region3: #{tpu_custom_call.1} parent=1 // pred_check_branch
      %9 = sbr.rel (0) target = $region5
    $region4: #{tpu_custom_call.1} parent=1 // pred_region
      %s11 = ssub.s32 1024, 1024
      %12 = vsyncadd [#allocation3], %s11
      %s14 = sshll.u32 [#allocation2], 4
      %s15 = int_to_ptr.vmem [resolvable:$true] %s14
      %17 = dma.hbm_to_vmem [thread:$0]  %s0, 1024, %s15, [#allocation3]
    $region5: #{tpu_custom_call.1} parent=1 // pred_fallthru
      _
    // Predicated region
    $region6: #{tpu_custom_call.1} parent=1 // pred_check
      _
    $region7: #{tpu_custom_call.1} parent=1 // pred_check_branch
      %19 = sbr.rel (0) target = $region9
    $region8: #{tpu_custom_call.1} parent=1 // pred_region
      %20 = dma.done [#allocation3], 1024
    $region9: #{tpu_custom_call.1} parent=1 // pred_fallthru
      _
    %v21 = vld [vmem:[#allocation2] sm:$0xff]
    %v22 = vld [vmem:[#allocation2 + $0x8] sm:$0xff]
    %v23 = vld [vmem:[#allocation2 + $0x10] sm:$0xff]
    %v24 = vld [vmem:[#allocation2 + $0x18] sm:$0xff]
    %v25 = vld [vmem:[#allocation2 + $0x20] sm:$0xff]
    %v26 = vld [vmem:[#allocation2 + $0x28] sm:$0xff]
    %v27 = vld [vmem:[#allocation2 + $0x30] sm:$0xff]
    %v28 = vld [vmem:[#allocation2 + $0x38] sm:$0xff]
    %v29 = vmul.f32 %v21, 8.0
    %v30 = vmul.f32 %v22, 8.0
    %v31 = vmul.f32 %v23, 8.0
    %v32 = vmul.f32 %v24, 8.0
    %v33 = vmul.f32 %v25, 8.0
    %v34 = vmul.f32 %v26, 8.0
    %v35 = vmul.f32 %v27, 8.0
    %v36 = vmul.f32 %v28, 8.0
    %v37 = vadd.f32 %v29, 1e-05
    %v38 = vadd.f32 %v30, 1e-05
    %v39 = vadd.f32 %v31, 1e-05
    %v40 = vadd.f32 %v32, 1e-05
    %v41 = vadd.f32 %v33, 1e-05
    %v42 = vadd.f32 %v34, 1e-05
    %v43 = vadd.f32 %v35, 1e-05
    %v44 = vadd.f32 %v36, 1e-05
    %v45 = vcvt.f32.s32.to.zero.pseudo %v37
    %v46 = vcvt.f32.s32.to.zero.pseudo %v38
    %v47 = vcvt.f32.s32.to.zero.pseudo %v39
    %v48 = vcvt.f32.s32.to.zero.pseudo %v40
    %v49 = vcvt.f32.s32.to.zero.pseudo %v41
    %v50 = vcvt.f32.s32.to.zero.pseudo %v42
    %v51 = vcvt.f32.s32.to.zero.pseudo %v43
    %v52 = vcvt.f32.s32.to.zero.pseudo %v44
    %vm53 = vcmp.lt.s32.totalorder %v45, 7
    %v54 = vsel %vm53, %v45, 7
    %vm55 = vcmp.lt.s32.totalorder %v46, 7
    %v56 = vsel %vm55, %v46, 7
    %vm57 = vcmp.lt.s32.totalorder %v47, 7
    %v58 = vsel %vm57, %v47, 7
    %vm59 = vcmp.lt.s32.totalorder %v48, 7
    %v60 = vsel %vm59, %v48, 7
    %vm61 = vcmp.lt.s32.totalorder %v49, 7
    %v62 = vsel %vm61, %v49, 7
    %vm63 = vcmp.lt.s32.totalorder %v50, 7
    %v64 = vsel %vm63, %v50, 7
    %vm65 = vcmp.lt.s32.totalorder %v51, 7
    %v66 = vsel %vm65, %v51, 7
    %vm67 = vcmp.lt.s32.totalorder %v52, 7
    %v68 = vsel %vm67, %v52, 7
    %v69 = vcvt.s32.f32 %v54
    %v70 = vcvt.s32.f32 %v56
    %v71 = vcvt.s32.f32 %v58
    %v72 = vcvt.s32.f32 %v60
    %v73 = vcvt.s32.f32 %v62
    %v74 = vcvt.s32.f32 %v64
    %v75 = vcvt.s32.f32 %v66
    %v76 = vcvt.s32.f32 %v68
    %v77 = vmul.f32 %v69, 0.125
    %v78 = vmul.f32 %v70, 0.125
    %v79 = vmul.f32 %v71, 0.125
    %v80 = vmul.f32 %v72, 0.125
    %v81 = vmul.f32 %v73, 0.125
    %v82 = vmul.f32 %v74, 0.125
    %v83 = vmul.f32 %v75, 0.125
    %v84 = vmul.f32 %v76, 0.125
    %v85 = vsub.f32 %v21, %v77
    %v86 = vsub.f32 %v22, %v78
    %v87 = vsub.f32 %v23, %v79
    %v88 = vsub.f32 %v24, %v80
    %v89 = vsub.f32 %v25, %v81
    %v90 = vsub.f32 %v26, %v82
    %v91 = vsub.f32 %v27, %v83
    %v92 = vsub.f32 %v28, %v84
    %vm93 = vcmp.eq.s32.totalorder %v54, 1
    %vm94 = vcmp.eq.s32.totalorder %v56, 1
    %vm95 = vcmp.eq.s32.totalorder %v58, 1
    %vm96 = vcmp.eq.s32.totalorder %v60, 1
    %vm97 = vcmp.eq.s32.totalorder %v62, 1
    %vm98 = vcmp.eq.s32.totalorder %v64, 1
    %vm99 = vcmp.eq.s32.totalorder %v66, 1
    %vm100 = vcmp.eq.s32.totalorder %v68, 1
    %v101 = vsel %vm93, -13.254834, -5.3539586
    %v102 = vsel %vm94, -13.254834, -5.3539586
    %v103 = vsel %vm95, -13.254834, -5.3539586
    %v104 = vsel %vm96, -13.254834, -5.3539586
    %v105 = vsel %vm97, -13.254834, -5.3539586
    %v106 = vsel %vm98, -13.254834, -5.3539586
    %v107 = vsel %vm99, -13.254834, -5.3539586
    %v108 = vsel %vm100, -13.254834, -5.3539586
    %v109 = vsel %vm93, 4.829203, 7.155302
    %v110 = vsel %vm94, 4.829203, 7.155302
    %v111 = vsel %vm95, 4.829203, 7.155302
    %v112 = vsel %vm96, 4.829203, 7.155302
    %v113 = vsel %vm97, 4.829203, 7.155302
    %v114 = vsel %vm98, 4.829203, 7.155302
    %v115 = vsel %vm99, 4.829203, 7.155302
    %v116 = vsel %vm100, 4.829203, 7.155302
    %v117 = vsel %vm93, 0.76960677, 0.0
    %v118 = vsel %vm94, 0.76960677, 0.0
    %v119 = vsel %vm95, 0.76960677, 0.0
    %v120 = vsel %vm96, 0.76960677, 0.0
    %v121 = vsel %vm97, 0.76960677, 0.0
    %v122 = vsel %vm98, 0.76960677, 0.0
    %v123 = vsel %vm99, 0.76960677, 0.0
    %v124 = vsel %vm100, 0.76960677, 0.0
    %vm125 = vcmp.eq.s32.totalorder %v54, 2
    %vm126 = vcmp.eq.s32.totalorder %v56, 2
    %vm127 = vcmp.eq.s32.totalorder %v58, 2
    %vm128 = vcmp.eq.s32.totalorder %v60, 2
    %vm129 = vcmp.eq.s32.totalorder %v62, 2
    %vm130 = vcmp.eq.s32.totalorder %v64, 2
    %vm131 = vcmp.eq.s32.totalorder %v66, 2
    %vm132 = vcmp.eq.s32.totalorder %v68, 2
    %v133 = vsel %vm125, 17.499697, -21.069002
    %v134 = vsel %vm126, 17.499697, -21.069002
    %v135 = vsel %vm127, 17.499697, -21.069002
    %v136 = vsel %vm128, 17.499697, -21.069002
    %v137 = vsel %vm129, 17.499697, -21.069002
    %v138 = vsel %vm130, 17.499697, -21.069002
    %v139 = vsel %vm131, 17.499697, -21.069002
    %v140 = vsel %vm132, 17.499697, -21.069002
    %v141 = vsel %vm125, -21.15571, %v101
    %v142 = vsel %vm126, -21.15571, %v102
    %v143 = vsel %vm127, -21.15571, %v103
    %v144 = vsel %vm128, -21.15571, %v104
    %v145 = vsel %vm129, -21.15571, %v105
    %v146 = vsel %vm130, -21.15571, %v106
    %v147 = vsel %vm131, -21.15571, %v107
    %v148 = vsel %vm132, -21.15571, %v108
    %v149 = vsel %vm125, 0.5278852, %v109
    %v150 = vsel %vm126, 0.5278852, %v110
    %v151 = vsel %vm127, 0.5278852, %v111
    %v152 = vsel %vm128, 0.5278852, %v112
    %v153 = vsel %vm129, 0.5278852, %v113
    %v154 = vsel %vm130, 0.5278852, %v114
    %v155 = vsel %vm131, 0.5278852, %v115
    %v156 = vsel %vm132, 0.5278852, %v116
    %v157 = vsel %vm125, 1.125, %v117
    %v158 = vsel %vm126, 1.125, %v118
    %v159 = vsel %vm127, 1.125, %v119
    %v160 = vsel %vm128, 1.125, %v120
    %v161 = vsel %vm129, 1.125, %v121
    %v162 = vsel %vm130, 1.125, %v122
    %v163 = vsel %vm131, 1.125, %v123
    %v164 = vsel %vm132, 1.125, %v124
    %vm165 = vcmp.eq.s32.totalorder %v54, 3
    %vm166 = vcmp.eq.s32.totalorder %v56, 3
    %vm167 = vcmp.eq.s32.totalorder %v58, 3
    %vm168 = vcmp.eq.s32.totalorder %v60, 3
    %vm169 = vcmp.eq.s32.totalorder %v62, 3
    %vm170 = vcmp.eq.s32.totalorder %v64, 3
    %vm171 = vcmp.eq.s32.totalorder %v66, 3
    %vm172 = vcmp.eq.s32.totalorder %v68, 3
    %v173 = vsel %vm165, 38.91553, %v133
    %v174 = vsel %vm166, 38.91553, %v134
    %v175 = vsel %vm167, 38.91553, %v135
    %v176 = vsel %vm168, 38.91553, %v136
    %v177 = vsel %vm169, 38.91553, %v137
    %v178 = vsel %vm170, 38.91553, %v138
    %v179 = vsel %vm171, 38.91553, %v139
    %v180 = vsel %vm172, 38.91553, %v140
    %v181 = vsel %vm165, -14.593324, %v141
    %v182 = vsel %vm166, -14.593324, %v142
    %v183 = vsel %vm167, -14.593324, %v143
    %v184 = vsel %vm168, -14.593324, %v144
    %v185 = vsel %vm169, -14.593324, %v145
    %v186 = vsel %vm170, -14.593324, %v146
    %v187 = vsel %vm171, -14.593324, %v147
    %v188 = vsel %vm172, -14.593324, %v148
    %v189 = vsel %vm165, -3.940744, %v149
    %v190 = vsel %vm166, -3.940744, %v150
    %v191 = vsel %vm167, -3.940744, %v151
    %v192 = vsel %vm168, -3.940744, %v152
    %v193 = vsel %vm169, -3.940744, %v153
    %v194 = vsel %vm170, -3.940744, %v154
    %v195 = vsel %vm171, -3.940744, %v155
    %v196 = vsel %vm172, -3.940744, %v156
    %v197 = vsel %vm165, 0.89460677, %v157
    %v198 = vsel %vm166, 0.89460677, %v158
    %v199 = vsel %vm167, 0.89460677, %v159
    %v200 = vsel %vm168, 0.89460677, %v160
    %v201 = vsel %vm169, 0.89460677, %v161
    %v202 = vsel %vm170, 0.89460677, %v162
    %v203 = vsel %vm171, 0.89460677, %v163
    %v204 = vsel %vm172, 0.89460677, %v164
    %vm205 = vcmp.eq.s32.totalorder %v54, 4
    %vm206 = vcmp.eq.s32.totalorder %v56, 4
    %vm207 = vcmp.eq.s32.totalorder %v58, 4
    %vm208 = vcmp.eq.s32.totalorder %v60, 4
    %vm209 = vcmp.eq.s32.totalorder %v62, 4
    %vm210 = vcmp.eq.s32.totalorder %v64, 4
    %vm211 = vcmp.eq.s32.totalorder %v66, 4
    %vm212 = vcmp.eq.s32.totalorder %v68, 4
    %v213 = vsel %vm205, 38.91553, %v173
    %v214 = vsel %vm206, 38.91553, %v174
    %v215 = vsel %vm207, 38.91553, %v175
    %v216 = vsel %vm208, 38.91553, %v176
    %v217 = vsel %vm209, 38.91553, %v177
    %v218 = vsel %vm210, 38.91553, %v178
    %v219 = vsel %vm211, 38.91553, %v179
    %v220 = vsel %vm212, 38.91553, %v180
    %v221 = vsel %vm205, -7.1054274e-15, %v181
    %v222 = vsel %vm206, -7.1054274e-15, %v182
    %v223 = vsel %vm207, -7.1054274e-15, %v183
    %v224 = vsel %vm208, -7.1054274e-15, %v184
    %v225 = vsel %vm209, -7.1054274e-15, %v185
    %v226 = vsel %vm210, -7.1054274e-15, %v186
    %v227 = vsel %vm211, -7.1054274e-15, %v187
    %v228 = vsel %vm212, -7.1054274e-15, %v188
    %v229 = vsel %vm205, -5.7649093, %v189
    %v230 = vsel %vm206, -5.7649093, %v190
    %v231 = vsel %vm207, -5.7649093, %v191
    %v232 = vsel %vm208, -5.7649093, %v192
    %v233 = vsel %vm209, -5.7649093, %v193
    %v234 = vsel %vm210, -5.7649093, %v194
    %v235 = vsel %vm211, -5.7649093, %v195
    %v236 = vsel %vm212, -5.7649093, %v196
    %v237 = vsel %vm205, 0.25, %v197
    %v238 = vsel %vm206, 0.25, %v198
    %v239 = vsel %vm207, 0.25, %v199
    %v240 = vsel %vm208, 0.25, %v200
    %v241 = vsel %vm209, 0.25, %v201
    %v242 = vsel %vm210, 0.25, %v202
    %v243 = vsel %vm211, 0.25, %v203
    %v244 = vsel %vm212, 0.25, %v204
    %vm245 = vcmp.eq.s32.totalorder %v54, 5
    %vm246 = vcmp.eq.s32.totalorder %v56, 5
    %vm247 = vcmp.eq.s32.totalorder %v58, 5
    %vm248 = vcmp.eq.s32.totalorder %v60, 5
    %vm249 = vcmp.eq.s32.totalorder %v62, 5
    %vm250 = vcmp.eq.s32.totalorder %v64, 5
    %vm251 = vcmp.eq.s32.totalorder %v66, 5
    %vm252 = vcmp.eq.s32.totalorder %v68, 5
    %v253 = vsel %vm245, 17.499697, %v213
    %v254 = vsel %vm246, 17.499697, %v214
    %v255 = vsel %vm247, 17.499697, %v215
    %v256 = vsel %vm248, 17.499697, %v216
    %v257 = vsel %vm249, 17.499697, %v217
    %v258 = vsel %vm250, 17.499697, %v218
    %v259 = vsel %vm251, 17.499697, %v219
    %v260 = vsel %vm252, 17.499697, %v220
    %v261 = vsel %vm245, 14.593324, %v221
    %v262 = vsel %vm246, 14.593324, %v222
    %v263 = vsel %vm247, 14.593324, %v223
    %v264 = vsel %vm248, 14.593324, %v224
    %v265 = vsel %vm249, 14.593324, %v225
    %v266 = vsel %vm250, 14.593324, %v226
    %v267 = vsel %vm251, 14.593324, %v227
    %v268 = vsel %vm252, 14.593324, %v228
    %v269 = vsel %vm245, -3.940744, %v229
    %v270 = vsel %vm246, -3.940744, %v230
    %v271 = vsel %vm247, -3.940744, %v231
    %v272 = vsel %vm248, -3.940744, %v232
    %v273 = vsel %vm249, -3.940744, %v233
    %v274 = vsel %vm250, -3.940744, %v234
    %v275 = vsel %vm251, -3.940744, %v235
    %v276 = vsel %vm252, -3.940744, %v236
    %v277 = vsel %vm245, -0.39460677, %v237
    %v278 = vsel %vm246, -0.39460677, %v238
    %v279 = vsel %vm247, -0.39460677, %v239
    %v280 = vsel %vm248, -0.39460677, %v240
    %v281 = vsel %vm249, -0.39460677, %v241
    %v282 = vsel %vm250, -0.39460677, %v242
    %v283 = vsel %vm251, -0.39460677, %v243
    %v284 = vsel %vm252, -0.39460677, %v244
    %vm285 = vcmp.eq.s32.totalorder %v54, 6
    %vm286 = vcmp.eq.s32.totalorder %v56, 6
    %vm287 = vcmp.eq.s32.totalorder %v58, 6
    %vm288 = vcmp.eq.s32.totalorder %v60, 6
    %vm289 = vcmp.eq.s32.totalorder %v62, 6
    %vm290 = vcmp.eq.s32.totalorder %v64, 6
    %vm291 = vcmp.eq.s32.totalorder %v66, 6
    %vm292 = vcmp.eq.s32.totalorder %v68, 6
    %v293 = vsel %vm285, -21.069002, %v253
    %v294 = vsel %vm286, -21.069002, %v254
    %v295 = vsel %vm287, -21.069002, %v255
    %v296 = vsel %vm288, -21.069002, %v256
    %v297 = vsel %vm289, -21.069002, %v257
    %v298 = vsel %vm290, -21.069002, %v258
    %v299 = vsel %vm291, -21.069002, %v259
    %v300 = vsel %vm292, -21.069002, %v260
    %v301 = vsel %vm285, 21.15571, %v261
    %v302 = vsel %vm286, 21.15571, %v262
    %v303 = vsel %vm287, 21.15571, %v263
    %v304 = vsel %vm288, 21.15571, %v264
    %v305 = vsel %vm289, 21.15571, %v265
    %v306 = vsel %vm290, 21.15571, %v266
    %v307 = vsel %vm291, 21.15571, %v267
    %v308 = vsel %vm292, 21.15571, %v268
    %v309 = vsel %vm285, 0.5278852, %v269
    %v310 = vsel %vm286, 0.5278852, %v270
    %v311 = vsel %vm287, 0.5278852, %v271
    %v312 = vsel %vm288, 0.5278852, %v272
    %v313 = vsel %vm289, 0.5278852, %v273
    %v314 = vsel %vm290, 0.5278852, %v274
    %v315 = vsel %vm291, 0.5278852, %v275
    %v316 = vsel %vm292, 0.5278852, %v276
    %v317 = vsel %vm285, -0.625, %v277
    %v318 = vsel %vm286, -0.625, %v278
    %v319 = vsel %vm287, -0.625, %v279
    %v320 = vsel %vm288, -0.625, %v280
    %v321 = vsel %vm289, -0.625, %v281
    %v322 = vsel %vm290, -0.625, %v282
    %v323 = vsel %vm291, -0.625, %v283
    %v324 = vsel %vm292, -0.625, %v284
    %vm325 = vcmp.eq.s32.totalorder %v54, 7
    %vm326 = vcmp.eq.s32.totalorder %v56, 7
    %vm327 = vcmp.eq.s32.totalorder %v58, 7
    %vm328 = vcmp.eq.s32.totalorder %v60, 7
    %vm329 = vcmp.eq.s32.totalorder %v62, 7
    %vm330 = vcmp.eq.s32.totalorder %v64, 7
    %vm331 = vcmp.eq.s32.totalorder %v66, 7
    %vm332 = vcmp.eq.s32.totalorder %v68, 7
    %v333 = vsel %vm325, -21.069002, %v293
    %v334 = vsel %vm326, -21.069002, %v294
    %v335 = vsel %vm327, -21.069002, %v295
    %v336 = vsel %vm328, -21.069002, %v296
    %v337 = vsel %vm329, -21.069002, %v297
    %v338 = vsel %vm330, -21.069002, %v298
    %v339 = vsel %vm331, -21.069002, %v299
    %v340 = vsel %vm332, -21.069002, %v300
    %v341 = vsel %vm325, 13.254834, %v301
    %v342 = vsel %vm326, 13.254834, %v302
    %v343 = vsel %vm327, 13.254834, %v303
    %v344 = vsel %vm328, 13.254834, %v304
    %v345 = vsel %vm329, 13.254834, %v305
    %v346 = vsel %vm330, 13.254834, %v306
    %v347 = vsel %vm331, 13.254834, %v307
    %v348 = vsel %vm332, 13.254834, %v308
    %v349 = vsel %vm325, 4.829203, %v309
    %v350 = vsel %vm326, 4.829203, %v310
    %v351 = vsel %vm327, 4.829203, %v311
    %v352 = vsel %vm328, 4.829203, %v312
    %v353 = vsel %vm329, 4.829203, %v313
    %v354 = vsel %vm330, 4.829203, %v314
    %v355 = vsel %vm331, 4.829203, %v315
    %v356 = vsel %vm332, 4.829203, %v316
    %v357 = vsel %vm325, -0.26960677, %v317
    %v358 = vsel %vm326, -0.26960677, %v318
    %v359 = vsel %vm327, -0.26960677, %v319
    %v360 = vsel %vm328, -0.26960677, %v320
    %v361 = vsel %vm329, -0.26960677, %v321
    %v362 = vsel %vm330, -0.26960677, %v322
    %v363 = vsel %vm331, -0.26960677, %v323
    %v364 = vsel %vm332, -0.26960677, %v324
    %v365 = vmul.f32 %v333, %v85
    %v366 = vmul.f32 %v334, %v86
    %v367 = vmul.f32 %v335, %v87
    %v368 = vmul.f32 %v336, %v88
    %v369 = vmul.f32 %v337, %v89
    %v370 = vmul.f32 %v338, %v90
    %v371 = vmul.f32 %v339, %v91
    %v372 = vmul.f32 %v340, %v92
    %v373 = vadd.f32 %v365, %v341
    %v374 = vadd.f32 %v366, %v342
    %v375 = vadd.f32 %v367, %v343
    %v376 = vadd.f32 %v368, %v344
    %v377 = vadd.f32 %v369, %v345
    %v378 = vadd.f32 %v370, %v346
    %v379 = vadd.f32 %v371, %v347
    %v380 = vadd.f32 %v372, %v348
    %v381 = vmul.f32 %v373, %v85
    %v382 = vmul.f32 %v374, %v86
    %v383 = vmul.f32 %v375, %v87
    %v384 = vmul.f32 %v376, %v88
    %v385 = vmul.f32 %v377, %v89
    %v386 = vmul.f32 %v378, %v90
    %v387 = vmul.f32 %v379, %v91
    %v388 = vmul.f32 %v380, %v92
    %v389 = vadd.f32 %v381, %v349
    %v390 = vadd.f32 %v382, %v350
    %v391 = vadd.f32 %v383, %v351
    %v392 = vadd.f32 %v384, %v352
    %v393 = vadd.f32 %v385, %v353
    %v394 = vadd.f32 %v386, %v354
    %v395 = vadd.f32 %v387, %v355
    %v396 = vadd.f32 %v388, %v356
    %v397 = vmul.f32 %v389, %v85
    %v398 = vmul.f32 %v390, %v86
    %v399 = vmul.f32 %v391, %v87
    %v400 = vmul.f32 %v392, %v88
    %v401 = vmul.f32 %v393, %v89
    %v402 = vmul.f32 %v394, %v90
    %v403 = vmul.f32 %v395, %v91
    %v404 = vmul.f32 %v396, %v92
    %v405 = vadd.f32 %v397, %v357
    %v406 = vadd.f32 %v398, %v358
    %v407 = vadd.f32 %v399, %v359
    %v408 = vadd.f32 %v400, %v360
    %v409 = vadd.f32 %v401, %v361
    %v410 = vadd.f32 %v402, %v362
    %v411 = vadd.f32 %v403, %v363
    %v412 = vadd.f32 %v404, %v364
    %413 = vst [vmem:[#allocation5] sm:$0xff] %v405
    %414 = vst [vmem:[#allocation5 + $0x8] sm:$0xff] %v406
    %415 = vst [vmem:[#allocation5 + $0x10] sm:$0xff] %v407
    %416 = vst [vmem:[#allocation5 + $0x18] sm:$0xff] %v408
    %417 = vst [vmem:[#allocation5 + $0x20] sm:$0xff] %v409
    %418 = vst [vmem:[#allocation5 + $0x28] sm:$0xff] %v410
    %419 = vst [vmem:[#allocation5 + $0x30] sm:$0xff] %v411
    %420 = vst [vmem:[#allocation5 + $0x38] sm:$0xff] %v412
    // Predicated region
    $region10: #{tpu_custom_call.1} parent=1 // pred_check
      _
    $region11: #{tpu_custom_call.1} parent=1 // pred_check_branch
      %422 = sbr.rel (0) target = $region13
    $region12: #{tpu_custom_call.1} parent=1 // pred_region
      %s424 = ssub.s32 1024, 1024
      %425 = vsyncadd [#allocation4], %s424
      %s427 = sshll.u32 [#allocation5], 4
      %s428 = int_to_ptr.vmem [resolvable:$true] %s427
      %430 = dma.vmem_to_hbm [thread:$0]  %s428, 1024, %s1, [#allocation4]
    $region13: #{tpu_custom_call.1} parent=1 // pred_fallthru
      _
    // Predicated region
    $region14: #{tpu_custom_call.1} parent=1 // pred_check
      _
    $region15: #{tpu_custom_call.1} parent=1 // pred_check_branch
      %432 = sbr.rel (0) target = $region17
    $region16: #{tpu_custom_call.1} parent=1 // pred_region
      %433 = dma.done [#allocation4], 1024
    $region17: #{tpu_custom_call.1} parent=1 // pred_fallthru
      _
    %434 = vsyncpa [#allocation3], 1
    %435 = vsyncpa [#allocation4], 1

</llo_original>
